<compile_context>
chip_gen: v7x
topology: tpu7x:2x2x1
jax: 0.10.0
libtpu: 0.0.40
codegen_flags: <defaults>
</compile_context>

<pallas_src>
import functools

import numpy as np
import jax
import jax.numpy as jnp
from jax.experimental import pallas as pl
from jax.experimental.pallas import tpu as pltpu


def _cost_volume_kernel(x1_ref, x2_ref, out_ref, *, channels, block_d):
    """One (h-block, batch, disparity-block) tile per grid step.

    x1_ref, x2_ref : (1, C, block_h, W) VMEM tiles (resident across the d axis)
    out_ref        : (1, 2*C, block_d, block_h, W) VMEM tile
    """
    d0 = pl.program_id(2) * block_d                        # first disparity in block

    x1 = x1_ref[...]                                       # (1, C, Hb, W)
    x2 = x2_ref[...]                                       # (1, C, Hb, W)
    _, C, Hb, W = x1.shape

    # Rank-2 view for the lane rotate.  block_h is sublane-aligned (wrapper
    # enforces a multiple of 8 for f32, or full H), so this is a free view —
    # no Mosaic relayout copy.
    x2_2d = x2.reshape(C * Hb, W)

    # Lane-index mask template: columns w < d are zero in both halves.
    # (1,1,1,W) iota broadcast inside jnp.where — no full-tile iota per step.
    lane = jax.lax.broadcasted_iota(jnp.int32, (1, 1, 1, W), 3)
    zero = jnp.zeros((), dtype=x1.dtype)

    # Statically unrolled over the disparity block (block_d is small).
    for i in range(block_d):
        d = d0 + i
        mask = lane >= d

        # Right image: shift by d along width with a single XLU lane-rotate;
        # the circular wrap lands in columns w < d, which the mask zeroes, so
        # for w >= d we get exactly x2[..., w - d] (PyTorch's input_2[..., :-d]).
        # Clamp the shift so d >= W (an all-zero plane) stays well defined.
        shift = jnp.minimum(d, W - 1)
        rolled = pltpu.roll(x2_2d, shift, axis=1).reshape(x1.shape)

        # Full-width, lane-dense (c, h, w) plane writes.
        out_ref[:, :channels, i, :, :] = jnp.where(mask, x1, zero)
        out_ref[:, channels:, i, :, :] = jnp.where(mask, rolled, zero)


def _pick_blocks(C, H, W, maxdisp, itemsize, budget, sublane,
                 block_h=None, block_d=None, max_unroll=16):
    """Pick (block_h, block_d) so the double-buffered working set fits `budget`."""

    def working_set(bh, bd):
        in_bytes = 2 * 2 * C * bh * W * itemsize            # 2 inputs x 2 buffers
        out_bytes = 2 * (2 * C) * bd * bh * W * itemsize    # double-buffered writeback
        return in_bytes + out_bytes

    if block_h is None:
        # Largest sublane-aligned divisor of H whose minimal (block_d=1) working
        # set fits the budget; fall back to the smallest legal candidate.
        h_cands = [h for h in range(H, 0, -1)
                   if H % h == 0 and (h % sublane == 0 or h == H)]
        block_h = next((h for h in h_cands if working_set(h, 1) <= budget),
                       h_cands[-1])

    if block_d is None:
        # Largest divisor of maxdisp (capped for unroll sanity) that still fits.
        d_cands = [d for d in range(min(maxdisp, max_unroll), 0, -1)
                   if maxdisp % d == 0]
        block_d = next((d for d in d_cands if working_set(block_h, d) <= budget),
                       1)

    return block_h, block_d


def cost_volume(input_1, input_2, maxdisp=1, *, block_h=None, block_d=None):
    """Pallas TPU cost volume: (N,C,H,W) x2 -> (N, 2C, maxdisp, H, W)."""
    assert input_1.shape == input_2.shape
    assert input_1.dtype == input_2.dtype
    N, C, H, W = input_1.shape
    dtype = input_1.dtype
    itemsize = jnp.dtype(dtype).itemsize
    # Sublane pack: 8 for 4-byte dtypes, 16 for bf16, 32 for int8/fp8.
    sublane = max(8, 32 // itemsize)

    # --- Per-generation VMEM budget -----------------------------------------
    try:
        vmem_cap = int(pltpu.get_tpu_info().vmem_capacity_bytes)
    except Exception:
        vmem_cap = 64 << 20                      # conservative: v7x per-core VMEM
    budget = max(vmem_cap // 3, 8 << 20)         # target working set per step
    vmem_limit = int(min(vmem_cap * 3 // 4, 112 << 20))

    block_h, block_d = _pick_blocks(C, H, W, maxdisp, itemsize, budget, sublane,
                                    block_h=block_h, block_d=block_d)

    assert H % block_h == 0, "block_h must divide H"
    assert block_h % sublane == 0 or block_h == H, "H block must be sublane-aligned"
    assert maxdisp % block_d == 0, "block_d must divide maxdisp"
    n_h = H // block_h
    n_d = maxdisp // block_d

    kernel = functools.partial(_cost_volume_kernel, channels=C, block_d=block_d)

    return pl.pallas_call(
        kernel,
        out_shape=jax.ShapeDtypeStruct((N, 2 * C, maxdisp, H, W), dtype),
        # h-block axis leads so the v7x 2-TC split lands on H (disjoint output
        # ranges, no duplicated input fetch) even when N == 1; the disparity
        # axis is innermost and "arbitrary" so inputs stay resident across d.
        grid=(n_h, N, n_d),
        in_specs=[
            # index_maps ignore d -> inputs are not re-fetched across d.
            pl.BlockSpec((1, C, block_h, W), lambda h, b, d: (b, 0, h, 0)),
            pl.BlockSpec((1, C, block_h, W), lambda h, b, d: (b, 0, h, 0)),
        ],
        out_specs=pl.BlockSpec((1, 2 * C, block_d, block_h, W),
                               lambda h, b, d: (b, 0, d, h, 0)),
        compiler_params=pltpu.CompilerParams(
            dimension_semantics=("parallel", "parallel", "arbitrary"),
            vmem_limit_bytes=vmem_limit),
    )(input_1, input_2)


def cost_volume_reference(x1, x2, maxdisp):
    """Pure numpy mirror of the PyTorch CostVolumeF.forward."""
    x1 = np.asarray(x1)
    x2 = np.asarray(x2)
    N, C, H, W = x1.shape
    out = np.zeros((N, 2 * C, maxdisp, H, W), dtype=x1.dtype)
    for d in range(maxdisp):
        if d > 0:
            out[:, :C, d, :, d:] = x1[:, :, :, d:]
            out[:, C:, d, :, d:] = x2[:, :, :, :-d]
        else:
            out[:, :C, 0] = x1
            out[:, C:, 0] = x2
    return out


if __name__ == "__main__":
    key = jax.random.PRNGKey(0)
    k1, k2 = jax.random.split(key)

    # Small but lane-aligned shapes (W = 128 lanes, as in real stereo nets).
    N, C, H, W = 2, 4, 16, 128
    maxdisp = 4

    input_1 = jax.random.normal(k1, (N, C, H, W), dtype=jnp.float32)
    input_2 = jax.random.normal(k2, (N, C, H, W), dtype=jnp.float32)

    ref = cost_volume_reference(input_1, input_2, maxdisp)

    # Auto-derived block sizes (full-H / full-maxdisp blocks at this size).
    out = jax.block_until_ready(cost_volume(input_1, input_2, maxdisp=maxdisp))
    np.testing.assert_array_equal(np.asarray(out), ref)

    # Explicitly tiled variant (exercises the H- and disparity-blocked paths
    # used for realistic PSMNet shapes on v7x's smaller VMEM).
    out_t = jax.block_until_ready(
        cost_volume(input_1, input_2, maxdisp=maxdisp, block_h=8, block_d=2))
    np.testing.assert_array_equal(np.asarray(out_t), ref)

    print("KERNEL_OK")
</pallas_src>

<mosaic_0001>
module attributes {stable_mosaic.version = 11 : i64} {
  func.func @_cost_volume_kernel(%arg0: i32, %arg1: i32, %arg2: i32, %arg3: memref<1x4x16x128xf32, #tpu.memory_space<vmem>>, %arg4: memref<1x4x16x128xf32, #tpu.memory_space<vmem>>, %arg5: memref<1x8x4x16x128xf32, #tpu.memory_space<vmem>>) attributes {dimension_semantics = [#tpu.dimension_semantics<parallel>, #tpu.dimension_semantics<parallel>, #tpu.dimension_semantics<arbitrary>], iteration_bounds = array<i64: 1, 2, 1>, scalar_prefetch = 0 : i64, scratch_operands = 0 : i64, tpu.core_type = #tpu.core_type<tc>, window_params = [{transform_indices = @transform_0, window_bounds = array<i64: 1, 4, 16, 128>}, {transform_indices = @transform_1, window_bounds = array<i64: 1, 4, 16, 128>}, {transform_indices = @transform_2, window_bounds = array<i64: 1, 8, 4, 16, 128>}]} {
    %c4_i32 = arith.constant 4 : i32
    %0 = arith.muli %arg2, %c4_i32 : i32
    %c0 = arith.constant 0 : index
    %c0_0 = arith.constant 0 : index
    %c0_1 = arith.constant 0 : index
    %c0_2 = arith.constant 0 : index
    %1 = vector.load %arg3[%c0, %c0_0, %c0_1, %c0_2] : memref<1x4x16x128xf32, #tpu.memory_space<vmem>>, vector<1x4x16x128xf32>
    %c0_3 = arith.constant 0 : index
    %c0_4 = arith.constant 0 : index
    %c0_5 = arith.constant 0 : index
    %c0_6 = arith.constant 0 : index
    %2 = vector.load %arg4[%c0_3, %c0_4, %c0_5, %c0_6] : memref<1x4x16x128xf32, #tpu.memory_space<vmem>>, vector<1x4x16x128xf32>
    %3 = vector.shape_cast %2 : vector<1x4x16x128xf32> to vector<64x128xf32>
    %4 = tpu.iota {dimensions = array<i32: 3>} : vector<1x1x1x128xi32>
    %c0_i32 = arith.constant 0 : i32
    %5 = arith.addi %0, %c0_i32 : i32
    %6 = vector.broadcast %5 : i32 to vector<1x1x1x128xi32>
    %7 = arith.cmpi sge, %4, %6 : vector<1x1x1x128xi32>
    %c127_i32 = arith.constant 127 : i32
    %8 = arith.minsi %5, %c127_i32 : i32
    %9 = tpu.dynamic_rotate %3 by %8 dim 1 : vector<64x128xf32>, i32 -> vector<64x128xf32>
    %10 = vector.shape_cast %9 : vector<64x128xf32> to vector<1x4x16x128xf32>
    %cst = arith.constant 0.000000e+00 : f32
    %11 = vector.shape_cast %7 : vector<1x1x1x128xi1> to vector<1x1x1x128xi1>
    %12 = vector.broadcast %11 : vector<1x1x1x128xi1> to vector<1x4x16x128xi1>
    %13 = vector.broadcast %cst : f32 to vector<1x4x16x128xf32>
    %14 = arith.select %12, %1, %13 : vector<1x4x16x128xi1>, vector<1x4x16x128xf32>
    %c0_7 = arith.constant 0 : index
    %c0_8 = arith.constant 0 : index
    %c0_9 = arith.constant 0 : index
    %c0_10 = arith.constant 0 : index
    %c0_11 = arith.constant 0 : index
    %15 = vector.load %arg5[%c0_7, %c0_8, %c0_9, %c0_10, %c0_11] : memref<1x8x4x16x128xf32, #tpu.memory_space<vmem>>, vector<1x4x1x16x128xf32>
    %16 = vector.shape_cast %15 : vector<1x4x1x16x128xf32> to vector<1x4x16x128xf32>
    %17 = vector.shape_cast %14 : vector<1x4x16x128xf32> to vector<1x4x1x16x128xf32>
    tpu.vector_store %arg5[%c0_7, %c0_8, %c0_9, %c0_10, %c0_11], %17 {strides = array<i32>} : memref<1x8x4x16x128xf32, #tpu.memory_space<vmem>>, vector<1x4x1x16x128xf32>,
    %cst_12 = arith.constant 0.000000e+00 : f32
    %18 = vector.shape_cast %7 : vector<1x1x1x128xi1> to vector<1x1x1x128xi1>
    %19 = vector.broadcast %18 : vector<1x1x1x128xi1> to vector<1x4x16x128xi1>
    %20 = vector.broadcast %cst_12 : f32 to vector<1x4x16x128xf32>
    %21 = arith.select %19, %10, %20 : vector<1x4x16x128xi1>, vector<1x4x16x128xf32>
    %c0_13 = arith.constant 0 : index
    %c4 = arith.constant 4 : index
    %c0_14 = arith.constant 0 : index
    %c0_15 = arith.constant 0 : index
    %c0_16 = arith.constant 0 : index
    %22 = vector.load %arg5[%c0_13, %c4, %c0_14, %c0_15, %c0_16] : memref<1x8x4x16x128xf32, #tpu.memory_space<vmem>>, vector<1x4x1x16x128xf32>
    %23 = vector.shape_cast %22 : vector<1x4x1x16x128xf32> to vector<1x4x16x128xf32>
    %24 = vector.shape_cast %21 : vector<1x4x16x128xf32> to vector<1x4x1x16x128xf32>
    tpu.vector_store %arg5[%c0_13, %c4, %c0_14, %c0_15, %c0_16], %24 {strides = array<i32>} : memref<1x8x4x16x128xf32, #tpu.memory_space<vmem>>, vector<1x4x1x16x128xf32>,
    %c1_i32 = arith.constant 1 : i32
    %25 = arith.addi %0, %c1_i32 : i32
    %26 = vector.broadcast %25 : i32 to vector<1x1x1x128xi32>
    %27 = arith.cmpi sge, %4, %26 : vector<1x1x1x128xi32>
    %c127_i32_17 = arith.constant 127 : i32
    %28 = arith.minsi %25, %c127_i32_17 : i32
    %29 = tpu.dynamic_rotate %3 by %28 dim 1 : vector<64x128xf32>, i32 -> vector<64x128xf32>
    %30 = vector.shape_cast %29 : vector<64x128xf32> to vector<1x4x16x128xf32>
    %cst_18 = arith.constant 0.000000e+00 : f32
    %31 = vector.shape_cast %27 : vector<1x1x1x128xi1> to vector<1x1x1x128xi1>
    %32 = vector.broadcast %31 : vector<1x1x1x128xi1> to vector<1x4x16x128xi1>
    %33 = vector.broadcast %cst_18 : f32 to vector<1x4x16x128xf32>
    %34 = arith.select %32, %1, %33 : vector<1x4x16x128xi1>, vector<1x4x16x128xf32>
    %c0_19 = arith.constant 0 : index
    %c0_20 = arith.constant 0 : index
    %c1 = arith.constant 1 : index
    %c0_21 = arith.constant 0 : index
    %c0_22 = arith.constant 0 : index
    %35 = vector.load %arg5[%c0_19, %c0_20, %c1, %c0_21, %c0_22] : memref<1x8x4x16x128xf32, #tpu.memory_space<vmem>>, vector<1x4x1x16x128xf32>
    %36 = vector.shape_cast %35 : vector<1x4x1x16x128xf32> to vector<1x4x16x128xf32>
    %37 = vector.shape_cast %34 : vector<1x4x16x128xf32> to vector<1x4x1x16x128xf32>
    tpu.vector_store %arg5[%c0_19, %c0_20, %c1, %c0_21, %c0_22], %37 {strides = array<i32>} : memref<1x8x4x16x128xf32, #tpu.memory_space<vmem>>, vector<1x4x1x16x128xf32>,
    %cst_23 = arith.constant 0.000000e+00 : f32
    %38 = vector.shape_cast %27 : vector<1x1x1x128xi1> to vector<1x1x1x128xi1>
    %39 = vector.broadcast %38 : vector<1x1x1x128xi1> to vector<1x4x16x128xi1>
    %40 = vector.broadcast %cst_23 : f32 to vector<1x4x16x128xf32>
    %41 = arith.select %39, %30, %40 : vector<1x4x16x128xi1>, vector<1x4x16x128xf32>
    %c0_24 = arith.constant 0 : index
    %c4_25 = arith.constant 4 : index
    %c1_26 = arith.constant 1 : index
    %c0_27 = arith.constant 0 : index
    %c0_28 = arith.constant 0 : index
    %42 = vector.load %arg5[%c0_24, %c4_25, %c1_26, %c0_27, %c0_28] : memref<1x8x4x16x128xf32, #tpu.memory_space<vmem>>, vector<1x4x1x16x128xf32>
    %43 = vector.shape_cast %42 : vector<1x4x1x16x128xf32> to vector<1x4x16x128xf32>
    %44 = vector.shape_cast %41 : vector<1x4x16x128xf32> to vector<1x4x1x16x128xf32>
    tpu.vector_store %arg5[%c0_24, %c4_25, %c1_26, %c0_27, %c0_28], %44 {strides = array<i32>} : memref<1x8x4x16x128xf32, #tpu.memory_space<vmem>>, vector<1x4x1x16x128xf32>,
    %c2_i32 = arith.constant 2 : i32
    %45 = arith.addi %0, %c2_i32 : i32
    %46 = vector.broadcast %45 : i32 to vector<1x1x1x128xi32>
    %47 = arith.cmpi sge, %4, %46 : vector<1x1x1x128xi32>
    %c127_i32_29 = arith.constant 127 : i32
    %48 = arith.minsi %45, %c127_i32_29 : i32
    %49 = tpu.dynamic_rotate %3 by %48 dim 1 : vector<64x128xf32>, i32 -> vector<64x128xf32>
    %50 = vector.shape_cast %49 : vector<64x128xf32> to vector<1x4x16x128xf32>
    %cst_30 = arith.constant 0.000000e+00 : f32
    %51 = vector.shape_cast %47 : vector<1x1x1x128xi1> to vector<1x1x1x128xi1>
    %52 = vector.broadcast %51 : vector<1x1x1x128xi1> to vector<1x4x16x128xi1>
    %53 = vector.broadcast %cst_30 : f32 to vector<1x4x16x128xf32>
    %54 = arith.select %52, %1, %53 : vector<1x4x16x128xi1>, vector<1x4x16x128xf32>
    %c0_31 = arith.constant 0 : index
    %c0_32 = arith.constant 0 : index
    %c2 = arith.constant 2 : index
    %c0_33 = arith.constant 0 : index
    %c0_34 = arith.constant 0 : index
    %55 = vector.load %arg5[%c0_31, %c0_32, %c2, %c0_33, %c0_34] : memref<1x8x4x16x128xf32, #tpu.memory_space<vmem>>, vector<1x4x1x16x128xf32>
    %56 = vector.shape_cast %55 : vector<1x4x1x16x128xf32> to vector<1x4x16x128xf32>
    %57 = vector.shape_cast %54 : vector<1x4x16x128xf32> to vector<1x4x1x16x128xf32>
    tpu.vector_store %arg5[%c0_31, %c0_32, %c2, %c0_33, %c0_34], %57 {strides = array<i32>} : memref<1x8x4x16x128xf32, #tpu.memory_space<vmem>>, vector<1x4x1x16x128xf32>,
    %cst_35 = arith.constant 0.000000e+00 : f32
    %58 = vector.shape_cast %47 : vector<1x1x1x128xi1> to vector<1x1x1x128xi1>
    %59 = vector.broadcast %58 : vector<1x1x1x128xi1> to vector<1x4x16x128xi1>
    %60 = vector.broadcast %cst_35 : f32 to vector<1x4x16x128xf32>
    %61 = arith.select %59, %50, %60 : vector<1x4x16x128xi1>, vector<1x4x16x128xf32>
    %c0_36 = arith.constant 0 : index
    %c4_37 = arith.constant 4 : index
    %c2_38 = arith.constant 2 : index
    %c0_39 = arith.constant 0 : index
    %c0_40 = arith.constant 0 : index
    %62 = vector.load %arg5[%c0_36, %c4_37, %c2_38, %c0_39, %c0_40] : memref<1x8x4x16x128xf32, #tpu.memory_space<vmem>>, vector<1x4x1x16x128xf32>
    %63 = vector.shape_cast %62 : vector<1x4x1x16x128xf32> to vector<1x4x16x128xf32>
    %64 = vector.shape_cast %61 : vector<1x4x16x128xf32> to vector<1x4x1x16x128xf32>
    tpu.vector_store %arg5[%c0_36, %c4_37, %c2_38, %c0_39, %c0_40], %64 {strides = array<i32>} : memref<1x8x4x16x128xf32, #tpu.memory_space<vmem>>, vector<1x4x1x16x128xf32>,
    %c3_i32 = arith.constant 3 : i32
    %65 = arith.addi %0, %c3_i32 : i32
    %66 = vector.broadcast %65 : i32 to vector<1x1x1x128xi32>
    %67 = arith.cmpi sge, %4, %66 : vector<1x1x1x128xi32>
    %c127_i32_41 = arith.constant 127 : i32
    %68 = arith.minsi %65, %c127_i32_41 : i32
    %69 = tpu.dynamic_rotate %3 by %68 dim 1 : vector<64x128xf32>, i32 -> vector<64x128xf32>
    %70 = vector.shape_cast %69 : vector<64x128xf32> to vector<1x4x16x128xf32>
    %cst_42 = arith.constant 0.000000e+00 : f32
    %71 = vector.shape_cast %67 : vector<1x1x1x128xi1> to vector<1x1x1x128xi1>
    %72 = vector.broadcast %71 : vector<1x1x1x128xi1> to vector<1x4x16x128xi1>
    %73 = vector.broadcast %cst_42 : f32 to vector<1x4x16x128xf32>
    %74 = arith.select %72, %1, %73 : vector<1x4x16x128xi1>, vector<1x4x16x128xf32>
    %c0_43 = arith.constant 0 : index
    %c0_44 = arith.constant 0 : index
    %c3 = arith.constant 3 : index
    %c0_45 = arith.constant 0 : index
    %c0_46 = arith.constant 0 : index
    %75 = vector.load %arg5[%c0_43, %c0_44, %c3, %c0_45, %c0_46] : memref<1x8x4x16x128xf32, #tpu.memory_space<vmem>>, vector<1x4x1x16x128xf32>
    %76 = vector.shape_cast %75 : vector<1x4x1x16x128xf32> to vector<1x4x16x128xf32>
    %77 = vector.shape_cast %74 : vector<1x4x16x128xf32> to vector<1x4x1x16x128xf32>
    tpu.vector_store %arg5[%c0_43, %c0_44, %c3, %c0_45, %c0_46], %77 {strides = array<i32>} : memref<1x8x4x16x128xf32, #tpu.memory_space<vmem>>, vector<1x4x1x16x128xf32>,
    %cst_47 = arith.constant 0.000000e+00 : f32
    %78 = vector.shape_cast %67 : vector<1x1x1x128xi1> to vector<1x1x1x128xi1>
    %79 = vector.broadcast %78 : vector<1x1x1x128xi1> to vector<1x4x16x128xi1>
    %80 = vector.broadcast %cst_47 : f32 to vector<1x4x16x128xf32>
    %81 = arith.select %79, %70, %80 : vector<1x4x16x128xi1>, vector<1x4x16x128xf32>
    %c0_48 = arith.constant 0 : index
    %c4_49 = arith.constant 4 : index
    %c3_50 = arith.constant 3 : index
    %c0_51 = arith.constant 0 : index
    %c0_52 = arith.constant 0 : index
    %82 = vector.load %arg5[%c0_48, %c4_49, %c3_50, %c0_51, %c0_52] : memref<1x8x4x16x128xf32, #tpu.memory_space<vmem>>, vector<1x4x1x16x128xf32>
    %83 = vector.shape_cast %82 : vector<1x4x1x16x128xf32> to vector<1x4x16x128xf32>
    %84 = vector.shape_cast %81 : vector<1x4x16x128xf32> to vector<1x4x1x16x128xf32>
    tpu.vector_store %arg5[%c0_48, %c4_49, %c3_50, %c0_51, %c0_52], %84 {strides = array<i32>} : memref<1x8x4x16x128xf32, #tpu.memory_space<vmem>>, vector<1x4x1x16x128xf32>,
    return
  }
  func.func @transform_0(%arg0: i32, %arg1: i32, %arg2: i32) -> (i32, i32, i32, i32) {
    %c0_i32 = arith.constant 0 : i32
    %c0_i32_0 = arith.constant 0 : i32
    %c0_i32_1 = arith.constant 0 : i32
    return %arg1, %c0_i32, %arg0, %c0_i32_0 : i32, i32, i32, i32
  }
  func.func @transform_1(%arg0: i32, %arg1: i32, %arg2: i32) -> (i32, i32, i32, i32) {
    %c0_i32 = arith.constant 0 : i32
    %c0_i32_0 = arith.constant 0 : i32
    %c0_i32_1 = arith.constant 0 : i32
    return %arg1, %c0_i32, %arg0, %c0_i32_0 : i32, i32, i32, i32
  }
  func.func @transform_2(%arg0: i32, %arg1: i32, %arg2: i32) -> (i32, i32, i32, i32, i32) {
    %c0_i32 = arith.constant 0 : i32
    %c0_i32_0 = arith.constant 0 : i32
    %c0_i32_1 = arith.constant 0 : i32
    return %arg1, %c0_i32, %arg2, %arg0, %c0_i32_0 : i32, i32, i32, i32, i32
  }
}

</mosaic_0001>

<llo_original>
// kernel: tpu_custom_call.1
$region0: #{tpu_custom_call.1}
  #allocation0 [shape = 'u32[]', space=smem, size = 0x4, offset = 0x4, fixed_abs, tag = 'smem constant byte address 0x4 - core index']
  #allocation1 [shape = 'u32[144,128]{1,0:T(1,128)}', space=vmem, size = 0x12000, scoped, tag = 'internal scratch']
  %s0 = inlined_call_operand.hbm [shape: f32[2,4,16,128], index: 0, kind: input, shape index: {}]
  %s1 = inlined_call_operand.hbm [shape: f32[2,4,16,128], index: 1, kind: input, shape index: {}]
  %s2 = inlined_call_operand.hbm [shape: f32[2,8,4,16,128], index: 2, kind: output, shape index: {}]
  %s3 = sld [smem:[#allocation0]]
  $region49: #{tpu_custom_call.1} parent=0
    _
  %s5 = ssub.s32 1, %s3
  %s6 = scalar_select 0, %s5, %s3
  $region1: #{tpu_custom_call.1} parent=0
    #allocation2 [shape = 'u8[65536]{0}', space=vmem, size = 0x10000, scoped, tag = 'input window, operand 0']
    #allocation3 [shape = 's32[2]{0}', space=sflag, size = 0x8, scoped, tag = 'scoped memory for tpu_custom_call.1']
    #allocation4 [shape = 's32[2]{0}', space=sflag, size = 0x8, scoped, tag = 'scoped memory for tpu_custom_call.1']
    #allocation5 [shape = 'u8[65536]{0}', space=vmem, size = 0x10000, scoped, tag = 'input window, operand 1']
    #allocation6 [shape = 's32[2]{0}', space=sflag, size = 0x8, scoped, tag = 'scoped memory for tpu_custom_call.1']
    #allocation7 [shape = 'u8[524288]{0}', space=vmem, size = 0x80000, scoped, tag = 'output window, operand 0']
    %7 = vsyncpa [#allocation3], 0
    %s8 = scalar_lea.sflag [#allocation3], 1
    %9 = vsyncpa %s8, 0
    %10 = vsyncpa [#allocation6], 0
    %s11 = scalar_lea.sflag [#allocation6], 1
    %12 = vsyncpa %s11, 0
    %13 = vsyncpa [#allocation4], 0
    %s14 = scalar_lea.sflag [#allocation4], 1
    %15 = vsyncpa %s14, 0
    loop: start=0, step=1, limit=4
    $region2: #{tpu_custom_call.1} parent=1 // loop_pre_header
      _
    $region3: #{tpu_custom_call.1} parent=1 // loop_header
      %s17 = sphi 0, %s21
      %p18 = scmp.ge.s32.totalorder %s17, 4
      %s24 = sphi 0, %s43
      %s25 = sphi 0, %s39
      %s26 = sphi 0, %s35
      %s27 = sphi 0, %s24
      %s28 = sphi 0, %s25
      %s29 = sphi 0, %s26
      %s30 = sphi 0, %s27
      %s31 = sphi 0, %s28
      %s32 = sphi 0, %s29
      %s48 = sphi 0, %s50
      %s51 = sphi 0, %s48
      %s52 = sphi 0, %s51
      %s68 = sphi 0, %s52
      %s76 = sphi 0, %s78
      %s79 = sphi 0, %s76
      %s80 = sphi 0, %s79
      %s96 = sphi 0, %s80
      %s106 = sphi 0, %s108
      %s109 = sphi 0, %s106
      %s110 = sphi 0, %s109
      %s126 = sphi 0, %s110
    $region4: #{tpu_custom_call.1} parent=1 // loop_header_branch
      %20 = sbr.rel (%p18) target = $region8
    $region5: #{tpu_custom_call.1} parent=1 // loop_body
      %s22 = ssub.s32 %s17, 1
      %s23 = ssub.s32 %s17, 2
      %s33 = sadd.s32 1, %s26
      %p34 = scmp.ge.s32.totalorder %s33, 1
      %s35 = scalar_select %p34, 0, %s33
      %s36 = sadd.s32 1, %s25
      %s37 = scalar_select %p34, %s36, %s25
      %p38 = scmp.ge.s32.totalorder %s37, 2
      %s39 = scalar_select %p38, 0, %s37
      %s40 = sadd.s32 1, %s24
      %s41 = scalar_select %p38, %s40, %s24
      %p42 = scmp.ge.s32.totalorder %s41, 1
      %s43 = scalar_select %p42, 0, %s41
      %s44 = ssub.s32 %s25, %s39
      %s45 = ssub.s32 %s24, %s43
      %s46 = sor.u32 %s44, %s45
      %p47 = scmp.eq.s32.totalorder %s46, 0
      %s49 = sadd.s32 %s48, 1
      %s50 = scalar_select %p47, %s48, %s49
      %p53 = pneg %p47
      %p54 = scmp.eq.s32.totalorder %s17, 1
      %p55 = por %p53, %p54
      %p56 = scmp.ne.s32.totalorder %s48, %s51
      %p57 = scmp.eq.s32.totalorder %s17, 0
      %p58 = por %p56, %p57
      %p59 = scmp.ne.s32.totalorder %s48, %s51
      %p60 = scmp.eq.s32.totalorder %s22, 1
      %p61 = por %p59, %p60
      %p62 = scmp.ne.s32.totalorder %s51, %s52
      %p63 = scmp.eq.s32.totalorder %s22, 0
      %p64 = por %p62, %p63
      %p65 = scmp.ne.s32.totalorder %s51, %s52
      %p66 = scmp.eq.s32.totalorder %s23, 1
      %p67 = por %p65, %p66
      %p69 = scmp.ne.s32.totalorder %s52, %s68
      %p70 = scmp.eq.s32.totalorder %s23, 0
      %p71 = por %p69, %p70
      %s72 = ssub.s32 %s25, %s39
      %s73 = ssub.s32 %s24, %s43
      %s74 = sor.u32 %s72, %s73
      %p75 = scmp.eq.s32.totalorder %s74, 0
      %s77 = sadd.s32 %s76, 1
      %s78 = scalar_select %p75, %s76, %s77
      %p81 = pneg %p75
      %p82 = scmp.eq.s32.totalorder %s17, 1
      %p83 = por %p81, %p82
      %p84 = scmp.ne.s32.totalorder %s76, %s79
      %p85 = scmp.eq.s32.totalorder %s17, 0
      %p86 = por %p84, %p85
      %p87 = scmp.ne.s32.totalorder %s76, %s79
      %p88 = scmp.eq.s32.totalorder %s22, 1
      %p89 = por %p87, %p88
      %p90 = scmp.ne.s32.totalorder %s79, %s80
      %p91 = scmp.eq.s32.totalorder %s22, 0
      %p92 = por %p90, %p91
      %p93 = scmp.ne.s32.totalorder %s79, %s80
      %p94 = scmp.eq.s32.totalorder %s23, 1
      %p95 = por %p93, %p94
      %p97 = scmp.ne.s32.totalorder %s80, %s96
      %p98 = scmp.eq.s32.totalorder %s23, 0
      %p99 = por %p97, %p98
      %s100 = ssub.s32 %s25, %s39
      %s101 = ssub.s32 %s26, %s35
      %s102 = sor.u32 %s100, %s101
      %s103 = ssub.s32 %s24, %s43
      %s104 = sor.u32 %s102, %s103
      %p105 = scmp.eq.s32.totalorder %s104, 0
      %s107 = sadd.s32 %s106, 1
      %s108 = scalar_select %p105, %s106, %s107
      %p111 = pneg %p105
      %p112 = scmp.eq.s32.totalorder %s17, 1
      %p113 = por %p111, %p112
      %p114 = scmp.ne.s32.totalorder %s106, %s109
      %p115 = scmp.eq.s32.totalorder %s17, 0
      %p116 = por %p114, %p115
      %p117 = scmp.ne.s32.totalorder %s106, %s109
      %p118 = scmp.eq.s32.totalorder %s22, 1
      %p119 = por %p117, %p118
      %p120 = scmp.ne.s32.totalorder %s109, %s110
      %p121 = scmp.eq.s32.totalorder %s22, 0
      %p122 = por %p120, %p121
      %p123 = scmp.ne.s32.totalorder %s109, %s110
      %p124 = scmp.eq.s32.totalorder %s23, 1
      %p125 = por %p123, %p124
      %p127 = scmp.ne.s32.totalorder %s110, %s126
      %p128 = scmp.eq.s32.totalorder %s23, 0
      %p129 = por %p127, %p128
      %p130 = scmp.le.s32.totalorder 1, %s17
      %p131 = scmp.lt.s32.totalorder %s17, 3
      %p132 = pnand %p130, %p131
      %p133 = pneg %p132
      // Predicated region
      $region9: #{tpu_custom_call.1} parent=5 // pred_check
        _
      $region10: #{tpu_custom_call.1} parent=5 // pred_check_branch
        %135 = sbr.rel (%p132) target = $region12
      $region11: #{tpu_custom_call.1} parent=5 // pred_region
        %s136 = ssub.s32 %s17, 1
      $region12: #{tpu_custom_call.1} parent=5 // pred_fallthru
        _
      %p137 = scmp.lt.s32.totalorder %s17, 2
      // Predicated region
      $region13: #{tpu_custom_call.1} parent=5 // pred_check
        %p138 = pneg %p137
      $region14: #{tpu_custom_call.1} parent=5 // pred_check_branch
        %140 = sbr.rel (%p138) target = $region16
      $region15: #{tpu_custom_call.1} parent=5 // pred_region
        // Predicated region
        $region17: #{tpu_custom_call.1} parent=15 // pred_check
          %p141 = pneg %p58
        $region18: #{tpu_custom_call.1} parent=15 // pred_check_branch
          %143 = sbr.rel (%p141) target = $region20
        $region19: #{tpu_custom_call.1} parent=15 // pred_region
          %s144 = sand.u32 %s48, 1
          %s145 = scalar_lea.sflag [#allocation3], %s144
          %s146 = sand.u32 %s48, 1
          %s147 = smul.addr %s146, 64
          %s148 = scalar_lea.vmem [#allocation2], %s147
          %s149 = smul.u32 2, %s24
          %s151 = ssub.s32 1024, 1024
          %152 = vsyncadd %s145, %s151
          %s153 = smul.addr %s25, 8
          %s154 = sadd.s32 %s149, %s153
          %s155 = smul.addr %s154, 128
          %s156 = scalar_lea.hbm %s0, %s155
          %s157 = sshll.u32 %s148, 4
          %s158 = int_to_ptr.vmem [resolvable:$true] %s157
          %163 = dma.hbm_to_vmem [thread:$0]  %s156, 1024, %s158, %s145, 128, 128, 8
        $region20: #{tpu_custom_call.1} parent=15 // pred_fallthru
          _
        // Predicated region
        $region21: #{tpu_custom_call.1} parent=15 // pred_check
          %p164 = pneg %p86
        $region22: #{tpu_custom_call.1} parent=15 // pred_check_branch
          %166 = sbr.rel (%p164) target = $region24
        $region23: #{tpu_custom_call.1} parent=15 // pred_region
          %s167 = sand.u32 %s76, 1
          %s168 = scalar_lea.sflag [#allocation6], %s167
          %s169 = sand.u32 %s76, 1
          %s170 = smul.addr %s169, 64
          %s171 = scalar_lea.vmem [#allocation5], %s170
          %s172 = smul.u32 2, %s24
          %s174 = ssub.s32 1024, 1024
          %175 = vsyncadd %s168, %s174
          %s176 = smul.addr %s25, 8
          %s177 = sadd.s32 %s172, %s176
          %s178 = smul.addr %s177, 128
          %s179 = scalar_lea.hbm %s1, %s178
          %s180 = sshll.u32 %s171, 4
          %s181 = int_to_ptr.vmem [resolvable:$true] %s180
          %186 = dma.hbm_to_vmem [thread:$0]  %s179, 1024, %s181, %s168, 128, 128, 8
        $region24: #{tpu_custom_call.1} parent=15 // pred_fallthru
          _
      $region16: #{tpu_custom_call.1} parent=5 // pred_fallthru
        _
      %p187 = scmp.le.s32.totalorder 1, %s17
      %p188 = scmp.lt.s32.totalorder %s17, 3
      %p189 = pnand %p187, %p188
      %p190 = pneg %p189
      // Predicated region
      $region25: #{tpu_custom_call.1} parent=5 // pred_check
        _
      $region26: #{tpu_custom_call.1} parent=5 // pred_check_branch
        %192 = sbr.rel (%p189) target = $region28
      $region27: #{tpu_custom_call.1} parent=5 // pred_region
        %s193 = ssub.s32 %s17, 1
        %s194 = sand.u32 %s51, 1
        %s195 = scalar_lea.sflag [#allocation3], %s194
        %s196 = sand.u32 %s51, 1
        %s197 = smul.addr %s196, 64
        %s198 = scalar_lea.vmem [#allocation2], %s197
        // Predicated region
        $region29: #{tpu_custom_call.1} parent=27 // pred_check
          %p199 = pneg %p64
        $region30: #{tpu_custom_call.1} parent=27 // pred_check_branch
          %201 = sbr.rel (%p199) target = $region32
        $region31: #{tpu_custom_call.1} parent=27 // pred_region
          %202 = dma.done %s195, 1024
        $region32: #{tpu_custom_call.1} parent=27 // pred_fallthru
          _
        %s203 = sand.u32 %s79, 1
        %s204 = scalar_lea.sflag [#allocation6], %s203
        %s205 = sand.u32 %s79, 1
        %s206 = smul.addr %s205, 64
        %s207 = scalar_lea.vmem [#allocation5], %s206
        // Predicated region
        $region33: #{tpu_custom_call.1} parent=27 // pred_check
          %p208 = pneg %p92
        $region34: #{tpu_custom_call.1} parent=27 // pred_check_branch
          %210 = sbr.rel (%p208) target = $region36
        $region35: #{tpu_custom_call.1} parent=27 // pred_region
          %211 = dma.done %s204, 1024
        $region36: #{tpu_custom_call.1} parent=27 // pred_fallthru
          _
        %s212 = sand.u32 %s51, 1
        %s213 = scalar_lea.sflag [#allocation3], %s212
        %s214 = sand.u32 %s51, 1
        %s215 = smul.addr %s214, 64
        %s216 = scalar_lea.vmem [#allocation2], %s215
        %p217 = pneg %p64
        %p218 = pneg %p61
        %s219 = sand.u32 %s79, 1
        %s220 = scalar_lea.sflag [#allocation6], %s219
        %s221 = sand.u32 %s79, 1
        %s222 = smul.addr %s221, 64
        %s223 = scalar_lea.vmem [#allocation5], %s222
        %p224 = pneg %p92
        %p225 = pneg %p89
        %p226 = pneg %p122
        %p227 = pneg %p119
        %s228 = sand.u32 %s109, 1
        %s229 = scalar_lea.sflag [#allocation4], %s228
        %s230 = sand.u32 %s109, 1
        %s231 = smul.addr %s230, 512
        %s232 = scalar_lea.vmem [#allocation7], %s231
        %s233 = smul.u32 2, %s27
        %s234 = smul.u32 2, %s27
        %s235 = smul.u32 4, %s29
        %s236 = smul.u32 2, %s27
        %s237 = smul.u32 %s29, 4
        %v238 = vld [vmem:[%s198] sm:$0xff]
        %v239 = vld [vmem:[%s198 + $0x8] sm:$0xff]
        %v240 = vld [vmem:[%s198 + $0x10] sm:$0xff]
        %v241 = vld [vmem:[%s198 + $0x18] sm:$0xff]
        %v242 = vld [vmem:[%s198 + $0x20] sm:$0xff]
        %v243 = vld [vmem:[%s198 + $0x28] sm:$0xff]
        %v244 = vld [vmem:[%s198 + $0x30] sm:$0xff]
        %v245 = vld [vmem:[%s198 + $0x38] sm:$0xff]
        %v246 = vld [vmem:[%s207] sm:$0xff]
        %v247 = vld [vmem:[%s207 + $0x8] sm:$0xff]
        %v248 = vld [vmem:[%s207 + $0x10] sm:$0xff]
        %v249 = vld [vmem:[%s207 + $0x18] sm:$0xff]
        %v250 = vld [vmem:[%s207 + $0x20] sm:$0xff]
        %v251 = vld [vmem:[%s207 + $0x28] sm:$0xff]
        %v252 = vld [vmem:[%s207 + $0x30] sm:$0xff]
        %v253 = vld [vmem:[%s207 + $0x38] sm:$0xff]
        %v254 = vlaneseq
        %v255 = vand.u32 %v254, 127
        %v256 = vstv %s237
        %vm257 = vcmp.ge.s32.totalorder %v255, %v256
        %p258 = scmp.lt.s32.totalorder %s237, 127
        %s259 = scalar_select %p258, %s237, 127
        %s260 = sand.u32 %s259, 127
        %s261 = sand.u32 %s260, 127
        %262 = vrot.lane.b32.xlu0 %v246, %s261
        %v263 = vpop.permute.xlu0 %262
        %264 = vrot.lane.b32.xlu0 %v247, %s261
        %v265 = vpop.permute.xlu0 %264
        %266 = vrot.lane.b32.xlu0 %v248, %s261
        %v267 = vpop.permute.xlu0 %266
        %268 = vrot.lane.b32.xlu0 %v249, %s261
        %v269 = vpop.permute.xlu0 %268
        %270 = vrot.lane.b32.xlu0 %v250, %s261
        %v271 = vpop.permute.xlu0 %270
        %272 = vrot.lane.b32.xlu0 %v251, %s261
        %v273 = vpop.permute.xlu0 %272
        %274 = vrot.lane.b32.xlu0 %v252, %s261
        %v275 = vpop.permute.xlu0 %274
        %276 = vrot.lane.b32.xlu0 %v253, %s261
        %v277 = vpop.permute.xlu0 %276
        %v278 = vsel %vm257, 1, 0
        %vm279 = vcmp.eq.s32.totalorder %v278, 1
        %v280 = vsel %vm279, %v238, 0.0
        %v281 = vsel %vm279, %v239, 0.0
        %v282 = vsel %vm279, %v240, 0.0
        %v283 = vsel %vm279, %v241, 0.0
        %v284 = vsel %vm279, %v242, 0.0
        %v285 = vsel %vm279, %v243, 0.0
        %v286 = vsel %vm279, %v244, 0.0
        %v287 = vsel %vm279, %v245, 0.0
        %288 = vst [vmem:[%s232] sm:$0xff] %v280
        %289 = vst [vmem:[%s232 + $0x8] sm:$0xff] %v281
        %290 = vst [vmem:[%s232 + $0x40] sm:$0xff] %v282
        %291 = vst [vmem:[%s232 + $0x48] sm:$0xff] %v283
        %292 = vst [vmem:[%s232 + $0x80] sm:$0xff] %v284
        %293 = vst [vmem:[%s232 + $0x88] sm:$0xff] %v285
        %294 = vst [vmem:[%s232 + $0xc0] sm:$0xff] %v286
        %295 = vst [vmem:[%s232 + $0xc8] sm:$0xff] %v287
        %v296 = vsel %vm279, %v263, 0.0
        %v297 = vsel %vm279, %v265, 0.0
        %v298 = vsel %vm279, %v267, 0.0
        %v299 = vsel %vm279, %v269, 0.0
        %v300 = vsel %vm279, %v271, 0.0
        %v301 = vsel %vm279, %v273, 0.0
        %v302 = vsel %vm279, %v275, 0.0
        %v303 = vsel %vm279, %v277, 0.0
        %s304 = scalar_lea.vmem %s232, 256 [#allocation7]
        %305 = vst [vmem:[%s304] sm:$0xff] %v296
        %306 = vst [vmem:[%s304 + $0x8] sm:$0xff] %v297
        %307 = vst [vmem:[%s304 + $0x40] sm:$0xff] %v298
        %308 = vst [vmem:[%s304 + $0x48] sm:$0xff] %v299
        %309 = vst [vmem:[%s304 + $0x80] sm:$0xff] %v300
        %310 = vst [vmem:[%s304 + $0x88] sm:$0xff] %v301
        %311 = vst [vmem:[%s304 + $0xc0] sm:$0xff] %v302
        %312 = vst [vmem:[%s304 + $0xc8] sm:$0xff] %v303
        %s313 = sadd.s32 %s237, 1
        %v314 = vstv %s313
        %vm315 = vcmp.ge.s32.totalorder %v255, %v314
        %p316 = scmp.lt.s32.totalorder %s313, 127
        %s317 = scalar_select %p316, %s313, 127
        %s318 = sand.u32 %s317, 127
        %s319 = sand.u32 %s318, 127
        %320 = vrot.lane.b32.xlu0 %v246, %s319
        %v321 = vpop.permute.xlu0 %320
        %322 = vrot.lane.b32.xlu0 %v247, %s319
        %v323 = vpop.permute.xlu0 %322
        %324 = vrot.lane.b32.xlu0 %v248, %s319
        %v325 = vpop.permute.xlu0 %324
        %326 = vrot.lane.b32.xlu0 %v249, %s319
        %v327 = vpop.permute.xlu0 %326
        %328 = vrot.lane.b32.xlu0 %v250, %s319
        %v329 = vpop.permute.xlu0 %328
        %330 = vrot.lane.b32.xlu0 %v251, %s319
        %v331 = vpop.permute.xlu0 %330
        %332 = vrot.lane.b32.xlu0 %v252, %s319
        %v333 = vpop.permute.xlu0 %332
        %334 = vrot.lane.b32.xlu0 %v253, %s319
        %v335 = vpop.permute.xlu0 %334
        %v336 = vsel %vm315, 1, 0
        %vm337 = vcmp.eq.s32.totalorder %v336, 1
        %v338 = vsel %vm337, %v238, 0.0
        %v339 = vsel %vm337, %v239, 0.0
        %v340 = vsel %vm337, %v240, 0.0
        %v341 = vsel %vm337, %v241, 0.0
        %v342 = vsel %vm337, %v242, 0.0
        %v343 = vsel %vm337, %v243, 0.0
        %v344 = vsel %vm337, %v244, 0.0
        %v345 = vsel %vm337, %v245, 0.0
        %s346 = scalar_lea.vmem %s232, 16 [#allocation7]
        %347 = vst [vmem:[%s346] sm:$0xff] %v338
        %348 = vst [vmem:[%s346 + $0x8] sm:$0xff] %v339
        %349 = vst [vmem:[%s346 + $0x40] sm:$0xff] %v340
        %350 = vst [vmem:[%s346 + $0x48] sm:$0xff] %v341
        %351 = vst [vmem:[%s346 + $0x80] sm:$0xff] %v342
        %352 = vst [vmem:[%s346 + $0x88] sm:$0xff] %v343
        %353 = vst [vmem:[%s346 + $0xc0] sm:$0xff] %v344
        %354 = vst [vmem:[%s346 + $0xc8] sm:$0xff] %v345
        %v355 = vsel %vm337, %v321, 0.0
        %v356 = vsel %vm337, %v323, 0.0
        %v357 = vsel %vm337, %v325, 0.0
        %v358 = vsel %vm337, %v327, 0.0
        %v359 = vsel %vm337, %v329, 0.0
        %v360 = vsel %vm337, %v331, 0.0
        %v361 = vsel %vm337, %v333, 0.0
        %v362 = vsel %vm337, %v335, 0.0
        %s363 = scalar_lea.vmem %s232, 272 [#allocation7]
        %364 = vst [vmem:[%s363] sm:$0xff] %v355
        %365 = vst [vmem:[%s363 + $0x8] sm:$0xff] %v356
        %366 = vst [vmem:[%s363 + $0x40] sm:$0xff] %v357
        %367 = vst [vmem:[%s363 + $0x48] sm:$0xff] %v358
        %368 = vst [vmem:[%s363 + $0x80] sm:$0xff] %v359
        %369 = vst [vmem:[%s363 + $0x88] sm:$0xff] %v360
        %370 = vst [vmem:[%s363 + $0xc0] sm:$0xff] %v361
        %371 = vst [vmem:[%s363 + $0xc8] sm:$0xff] %v362
        %s372 = sadd.s32 %s237, 2
        %v373 = vstv %s372
        %vm374 = vcmp.ge.s32.totalorder %v255, %v373
        %p375 = scmp.lt.s32.totalorder %s372, 127
        %s376 = scalar_select %p375, %s372, 127
        %s377 = sand.u32 %s376, 127
        %s378 = sand.u32 %s377, 127
        %379 = vrot.lane.b32.xlu0 %v246, %s378
        %v380 = vpop.permute.xlu0 %379
        %381 = vrot.lane.b32.xlu0 %v247, %s378
        %v382 = vpop.permute.xlu0 %381
        %383 = vrot.lane.b32.xlu0 %v248, %s378
        %v384 = vpop.permute.xlu0 %383
        %385 = vrot.lane.b32.xlu0 %v249, %s378
        %v386 = vpop.permute.xlu0 %385
        %387 = vrot.lane.b32.xlu0 %v250, %s378
        %v388 = vpop.permute.xlu0 %387
        %389 = vrot.lane.b32.xlu0 %v251, %s378
        %v390 = vpop.permute.xlu0 %389
        %391 = vrot.lane.b32.xlu0 %v252, %s378
        %v392 = vpop.permute.xlu0 %391
        %393 = vrot.lane.b32.xlu0 %v253, %s378
        %v394 = vpop.permute.xlu0 %393
        %v395 = vsel %vm374, 1, 0
        %vm396 = vcmp.eq.s32.totalorder %v395, 1
        %v397 = vsel %vm396, %v238, 0.0
        %v398 = vsel %vm396, %v239, 0.0
        %v399 = vsel %vm396, %v240, 0.0
        %v400 = vsel %vm396, %v241, 0.0
        %v401 = vsel %vm396, %v242, 0.0
        %v402 = vsel %vm396, %v243, 0.0
        %v403 = vsel %vm396, %v244, 0.0
        %v404 = vsel %vm396, %v245, 0.0
        %s405 = scalar_lea.vmem %s232, 32 [#allocation7]
        %406 = vst [vmem:[%s405] sm:$0xff] %v397
        %407 = vst [vmem:[%s405 + $0x8] sm:$0xff] %v398
        %408 = vst [vmem:[%s405 + $0x40] sm:$0xff] %v399
        %409 = vst [vmem:[%s405 + $0x48] sm:$0xff] %v400
        %410 = vst [vmem:[%s405 + $0x80] sm:$0xff] %v401
        %411 = vst [vmem:[%s405 + $0x88] sm:$0xff] %v402
        %412 = vst [vmem:[%s405 + $0xc0] sm:$0xff] %v403
        %413 = vst [vmem:[%s405 + $0xc8] sm:$0xff] %v404
        %v414 = vsel %vm396, %v380, 0.0
        %v415 = vsel %vm396, %v382, 0.0
        %v416 = vsel %vm396, %v384, 0.0
        %v417 = vsel %vm396, %v386, 0.0
        %v418 = vsel %vm396, %v388, 0.0
        %v419 = vsel %vm396, %v390, 0.0
        %v420 = vsel %vm396, %v392, 0.0
        %v421 = vsel %vm396, %v394, 0.0
        %s422 = scalar_lea.vmem %s232, 288 [#allocation7]
        %423 = vst [vmem:[%s422] sm:$0xff] %v414
        %424 = vst [vmem:[%s422 + $0x8] sm:$0xff] %v415
        %425 = vst [vmem:[%s422 + $0x40] sm:$0xff] %v416
        %426 = vst [vmem:[%s422 + $0x48] sm:$0xff] %v417
        %427 = vst [vmem:[%s422 + $0x80] sm:$0xff] %v418
        %428 = vst [vmem:[%s422 + $0x88] sm:$0xff] %v419
        %429 = vst [vmem:[%s422 + $0xc0] sm:$0xff] %v420
        %430 = vst [vmem:[%s422 + $0xc8] sm:$0xff] %v421
        %s431 = sadd.s32 %s237, 3
        %v432 = vstv %s431
        %vm433 = vcmp.ge.s32.totalorder %v255, %v432
        %p434 = scmp.lt.s32.totalorder %s431, 127
        %s435 = scalar_select %p434, %s431, 127
        %s436 = sand.u32 %s435, 127
        %s437 = sand.u32 %s436, 127
        %438 = vrot.lane.b32.xlu0 %v246, %s437
        %v439 = vpop.permute.xlu0 %438
        %440 = vrot.lane.b32.xlu0 %v247, %s437
        %v441 = vpop.permute.xlu0 %440
        %442 = vrot.lane.b32.xlu0 %v248, %s437
        %v443 = vpop.permute.xlu0 %442
        %444 = vrot.lane.b32.xlu0 %v249, %s437
        %v445 = vpop.permute.xlu0 %444
        %446 = vrot.lane.b32.xlu0 %v250, %s437
        %v447 = vpop.permute.xlu0 %446
        %448 = vrot.lane.b32.xlu0 %v251, %s437
        %v449 = vpop.permute.xlu0 %448
        %450 = vrot.lane.b32.xlu0 %v252, %s437
        %v451 = vpop.permute.xlu0 %450
        %452 = vrot.lane.b32.xlu0 %v253, %s437
        %v453 = vpop.permute.xlu0 %452
        %v454 = vsel %vm433, 1, 0
        %vm455 = vcmp.eq.s32.totalorder %v454, 1
        %v456 = vsel %vm455, %v238, 0.0
        %v457 = vsel %vm455, %v239, 0.0
        %v458 = vsel %vm455, %v240, 0.0
        %v459 = vsel %vm455, %v241, 0.0
        %v460 = vsel %vm455, %v242, 0.0
        %v461 = vsel %vm455, %v243, 0.0
        %v462 = vsel %vm455, %v244, 0.0
        %v463 = vsel %vm455, %v245, 0.0
        %s464 = scalar_lea.vmem %s232, 48 [#allocation7]
        %465 = vst [vmem:[%s464] sm:$0xff] %v456
        %466 = vst [vmem:[%s464 + $0x8] sm:$0xff] %v457
        %467 = vst [vmem:[%s464 + $0x40] sm:$0xff] %v458
        %468 = vst [vmem:[%s464 + $0x48] sm:$0xff] %v459
        %469 = vst [vmem:[%s464 + $0x80] sm:$0xff] %v460
        %470 = vst [vmem:[%s464 + $0x88] sm:$0xff] %v461
        %471 = vst [vmem:[%s464 + $0xc0] sm:$0xff] %v462
        %472 = vst [vmem:[%s464 + $0xc8] sm:$0xff] %v463
        %v473 = vsel %vm455, %v439, 0.0
        %v474 = vsel %vm455, %v441, 0.0
        %v475 = vsel %vm455, %v443, 0.0
        %v476 = vsel %vm455, %v445, 0.0
        %v477 = vsel %vm455, %v447, 0.0
        %v478 = vsel %vm455, %v449, 0.0
        %v479 = vsel %vm455, %v451, 0.0
        %v480 = vsel %vm455, %v453, 0.0
        %s481 = scalar_lea.vmem %s232, 304 [#allocation7]
        %482 = vst [vmem:[%s481] sm:$0xff] %v473
        %483 = vst [vmem:[%s481 + $0x8] sm:$0xff] %v474
        %484 = vst [vmem:[%s481 + $0x40] sm:$0xff] %v475
        %485 = vst [vmem:[%s481 + $0x48] sm:$0xff] %v476
        %486 = vst [vmem:[%s481 + $0x80] sm:$0xff] %v477
        %487 = vst [vmem:[%s481 + $0x88] sm:$0xff] %v478
        %488 = vst [vmem:[%s481 + $0xc0] sm:$0xff] %v479
        %489 = vst [vmem:[%s481 + $0xc8] sm:$0xff] %v480
        %s490 = sand.u32 %s109, 1
        %s491 = scalar_lea.sflag [#allocation4], %s490
        %s492 = sand.u32 %s109, 1
        %s493 = smul.addr %s492, 512
        %s494 = scalar_lea.vmem [#allocation7], %s493
        // Predicated region
        $region37: #{tpu_custom_call.1} parent=27 // pred_check
          %p495 = pneg %p119
        $region38: #{tpu_custom_call.1} parent=27 // pred_check_branch
          %497 = sbr.rel (%p495) target = $region40
        $region39: #{tpu_custom_call.1} parent=27 // pred_region
          %s498 = smul.u32 4, %s29
          %s499 = smul.u32 2, %s27
          %s501 = ssub.s32 8192, 8192
          %502 = vsyncadd %s491, %s501
          %s503 = smul.addr %s498, 2
          %s504 = sadd.s32 %s499, %s503
          %s505 = smul.addr %s28, 64
          %s506 = sadd.s32 %s504, %s505
          %s507 = smul.addr %s506, 128
          %s508 = scalar_lea.hbm %s2, %s507
          %s509 = sshll.u32 %s494, 4
          %s510 = int_to_ptr.vmem [resolvable:$true] %s509
          %515 = dma.vmem_to_hbm [thread:$0]  %s510, 8192, %s508, %s491, 128, 128, 8
        $region40: #{tpu_custom_call.1} parent=27 // pred_fallthru
          _
      $region28: #{tpu_custom_call.1} parent=5 // pred_fallthru
        _
      %p516 = scmp.le.s32.totalorder 2, %s17
      // Predicated region
      $region41: #{tpu_custom_call.1} parent=5 // pred_check
        %p517 = pneg %p516
      $region42: #{tpu_custom_call.1} parent=5 // pred_check_branch
        %519 = sbr.rel (%p517) target = $region44
      $region43: #{tpu_custom_call.1} parent=5 // pred_region
        %s520 = ssub.s32 %s17, 2
        // Predicated region
        $region45: #{tpu_custom_call.1} parent=43 // pred_check
          %p521 = pneg %p125
        $region46: #{tpu_custom_call.1} parent=43 // pred_check_branch
          %523 = sbr.rel (%p521) target = $region48
        $region47: #{tpu_custom_call.1} parent=43 // pred_region
          %s524 = sand.u32 %s110, 1
          %s525 = scalar_lea.sflag [#allocation4], %s524
          %s526 = sand.u32 %s110, 1
          %s527 = smul.addr %s526, 512
          %s528 = scalar_lea.vmem [#allocation7], %s527
          %529 = dma.done %s525, 8192
        $region48: #{tpu_custom_call.1} parent=43 // pred_fallthru
          _
      $region44: #{tpu_custom_call.1} parent=5 // pred_fallthru
        _
    $region6: #{tpu_custom_call.1} parent=1 // loop_footer
      %s21 = sadd.s32 1, %s17
    $region7: #{tpu_custom_call.1} parent=1 // loop_footer_branch
      %16 = sbr.rel target = $region3
    $region8: #{tpu_custom_call.1} parent=1 // loop_exit
      _
    %530 = vsyncpa [#allocation3], 1
    %s531 = scalar_lea.sflag [#allocation3], 1
    %532 = vsyncpa %s531, 1
    %533 = vsyncpa [#allocation6], 1
    %s534 = scalar_lea.sflag [#allocation6], 1
    %535 = vsyncpa %s534, 1
    %536 = vsyncpa [#allocation4], 1
    %s537 = scalar_lea.sflag [#allocation4], 1
    %538 = vsyncpa %s537, 1

</llo_original>
